<compile_context>
chip_gen: v7x
topology: tpu7x:2x2x1
jax: 0.10.0
libtpu: 0.0.40
codegen_flags: <defaults>
</compile_context>

<pallas_src>
import math

import jax
import jax.numpy as jnp
from jax.experimental import pallas as pl
from jax.experimental.pallas import tpu as pltpu


def _round_up(x, m):
    return ((x + m - 1) // m) * m


def aggr_kernel(x_ref, w1_ref, aux_h_ref, wva_ref, bias_v_ref, out_ref):
    rows, _ = x_ref.shape            # rows = Bb * S (flattened batch tile)
    D = wva_ref.shape[1]
    Bb = out_ref.shape[0]
    S = rows // Bb

    b1 = aux_h_ref[0:1, :]
    gamma = aux_h_ref[1:2, :]
    beta = aux_h_ref[2:3, :]
    ws = aux_h_ref[3:4, :]           # (1, H): folded score weights, scores = h . ws
    bias_v = bias_v_ref[...]         # (1, D): b2@Wv@Wo + bv@Wo + bo

    # ---- MLP hidden: Linear -> Tanh -> LayerNorm (biased var, eps=1e-5) ----
    x = x_ref[...]                                                        # (rows, C)
    h = jnp.tanh(jnp.dot(x, w1_ref[...], preferred_element_type=jnp.float32) + b1)
    mu = jnp.mean(h, axis=-1, keepdims=True)
    var = jnp.mean((h - mu) ** 2, axis=-1, keepdims=True)
    h = (h - mu) * jax.lax.rsqrt(var + 1e-5) * gamma + beta               # (rows, H)

    # ---- folded value/output projection + attention scores (no `e`) ----
    v = jnp.dot(h, wva_ref[...], preferred_element_type=jnp.float32) + bias_v  # (rows, D)
    s = jnp.sum(h * ws, axis=-1, keepdims=True)                           # (rows, 1) VPU+XLU

    # ---- per-sample softmax over S keys + weighted sum (VPU/XLU only) ----
    v3 = v.reshape(Bb, S, D)
    s3 = s.reshape(Bb, S, 1)
    m = jnp.max(s3, axis=1, keepdims=True)
    p = jnp.exp(s3 - m)
    p = p * pl.reciprocal(jnp.sum(p, axis=1, keepdims=True), approx=False)
    ctx = jnp.sum(p * v3, axis=1)                                         # (Bb, D)

    out_ref[...] = ctx.astype(out_ref.dtype)


def attention_stock_aggr(chrs, params, keepdims=False):
    B, S, C = chrs.shape
    H = params["w1"].shape[1]
    D = params["w2"].shape[1]

    # ---- batch-invariant algebraic folding (wrapper-side, exact up to f32 rounding) ----
    q = params["tok"] @ params["wq"] + params["bq"]                        # (1, D)
    qk = (q @ params["wk"].T) / math.sqrt(D)                               # (1, D)
    wvo = params["wv"] @ params["wo"]                                      # (D, D)
    wva = params["w2"] @ wvo                                               # (H, D)  W2 folded forward
    bias_v = params["b2"] @ wvo + params["bv"] @ params["wo"] + params["bo"]  # (1, D)
    ws = qk @ params["w2"].T                                               # (1, H)  (b2.qk const dropped)

    aux_h = jnp.concatenate(
        [params["b1"], params["gamma"], params["beta"], ws], axis=0)       # (4, H)

    # ---- tile selection: ~2048 flattened rows per grid step ----
    target_rows = 2048
    bb = max(1, target_rows // S)            # target samples per step
    if B <= bb:
        Bb = B                               # small batch: one grid step, full-extent blocks
    else:
        Bb = _round_up(bb, 8)                # keep output block sublane-aligned
    grid_b = pl.cdiv(B, Bb)                  # ragged last block handled by Pallas (no jnp.pad)

    x2 = chrs.reshape(B * S, C)              # free contiguous reshape; 2-D lane layout for the kernel

    out = pl.pallas_call(
        aggr_kernel,
        out_shape=jax.ShapeDtypeStruct((B, D), jnp.float32),
        grid=(grid_b,),
        in_specs=[
            pl.BlockSpec((Bb * S, C), lambda b: (b, 0)),   # flattened chrs tile
            pl.BlockSpec((C, H), lambda b: (0, 0)),        # W1
            pl.BlockSpec((4, H), lambda b: (0, 0)),        # [b1; gamma; beta; ws]
            pl.BlockSpec((H, D), lambda b: (0, 0)),        # W2 @ Wv @ Wo
            pl.BlockSpec((1, D), lambda b: (0, 0)),        # b2@Wv@Wo + bv@Wo + bo
        ],
        out_specs=pl.BlockSpec((Bb, D), lambda b: (b, 0)),
        compiler_params=pltpu.CompilerParams(dimension_semantics=("parallel",)),
    )(x2, params["w1"], aux_h, wva, bias_v)

    if keepdims:
        return out.reshape(B, 1, D)
    return out                               # matches embeds.view(B, out_dim)


def reference(chrs, p):
    """Pure-JAX reference of the same forward (unfused, unfolded weights)."""
    h = jnp.tanh(chrs @ p["w1"] + p["b1"])
    mu = jnp.mean(h, axis=-1, keepdims=True)
    var = jnp.mean((h - mu) ** 2, axis=-1, keepdims=True)
    h = (h - mu) / jnp.sqrt(var + 1e-5) * p["gamma"] + p["beta"]
    e = h @ p["w2"] + p["b2"]                                              # (B, S, D)
    B = chrs.shape[0]
    D = p["w2"].shape[1]
    q = p["tok"] @ p["wq"] + p["bq"]                                       # (1, D)
    q = jnp.broadcast_to(q[None], (B, 1, D))
    k = e @ p["wk"] + p["bk"]
    v = e @ p["wv"] + p["bv"]
    s = jnp.einsum("bqd,bkd->bqk", q, k) / math.sqrt(D)
    a = jax.nn.softmax(s, axis=-1)
    ctx = jnp.einsum("bqk,bkd->bqd", a, v)
    out = ctx @ p["wo"] + p["bo"]
    return out.reshape(B, D)


def init_params(key, C, H, D):
    ks = jax.random.split(key, 12)
    sc = 0.1
    return {
        "w1":    sc * jax.random.normal(ks[0], (C, H), jnp.float32),
        "b1":    sc * jax.random.normal(ks[1], (1, H), jnp.float32),
        "gamma": jnp.ones((1, H), jnp.float32),
        "beta":  jnp.zeros((1, H), jnp.float32),
        "w2":    sc * jax.random.normal(ks[2], (H, D), jnp.float32),
        "b2":    sc * jax.random.normal(ks[3], (1, D), jnp.float32),
        # nn.Parameter(torch.zeros(1,1,D)) -> small random so the attention
        # path is non-degenerate in this synthetic test.
        "tok":   sc * jax.random.normal(ks[4], (1, D), jnp.float32),
        "wq":    sc * jax.random.normal(ks[5], (D, D), jnp.float32),
        "bq":    sc * jax.random.normal(ks[6], (1, D), jnp.float32),
        "wk":    sc * jax.random.normal(ks[7], (D, D), jnp.float32),
        "bk":    sc * jax.random.normal(ks[8], (1, D), jnp.float32),
        "wv":    sc * jax.random.normal(ks[9], (D, D), jnp.float32),
        "bv":    sc * jax.random.normal(ks[10], (1, D), jnp.float32),
        "wo":    sc * jax.random.normal(ks[11], (D, D), jnp.float32),
        "bo":    jnp.zeros((1, D), jnp.float32),
    }


if __name__ == "__main__":
    B, S, C = 2, 8, 16          # batch, stocks per sample, features per stock
    H, D = 32, 32               # MLP.Config(arch=[16, 32, 32])

    key = jax.random.PRNGKey(0)
    k_x, k_p, k_x2, k_x3 = jax.random.split(key, 4)
    params = init_params(k_p, C, H, D)

    # tiny batch: single grid step with full-extent blocks
    chrs = jax.random.normal(k_x, (B, S, C), jnp.float32)
    out = jax.block_until_ready(attention_stock_aggr(chrs, params, keepdims=False))
    ref = reference(chrs, params)
    assert out.shape == (B, D)
    assert jnp.allclose(out, ref, atol=1e-4, rtol=1e-4), (
        f"max abs err {jnp.max(jnp.abs(out - ref))}")

    # keepdims path
    outk = jax.block_until_ready(attention_stock_aggr(chrs, params, keepdims=True))
    assert outk.shape == (B, 1, D)
    assert jnp.allclose(outk.reshape(B, D), ref, atol=1e-4, rtol=1e-4)

    # moderate batch: still one grid step (B <= 256), no padding anywhere
    B2 = 37
    chrs2 = jax.random.normal(k_x2, (B2, S, C), jnp.float32)
    out2 = jax.block_until_ready(attention_stock_aggr(chrs2, params))
    ref2 = reference(chrs2, params)
    assert out2.shape == (B2, D)
    assert jnp.allclose(out2, ref2, atol=1e-4, rtol=1e-4), (
        f"max abs err {jnp.max(jnp.abs(out2 - ref2))}")

    # large batch: multi-step grid with a ragged (masked) last block, no jnp.pad
    B3 = 300
    chrs3 = jax.random.normal(k_x3, (B3, S, C), jnp.float32)
    out3 = jax.block_until_ready(attention_stock_aggr(chrs3, params))
    ref3 = reference(chrs3, params)
    assert out3.shape == (B3, D)
    assert jnp.allclose(out3, ref3, atol=1e-4, rtol=1e-4), (
        f"max abs err {jnp.max(jnp.abs(out3 - ref3))}")

    print("KERNEL_OK")
</pallas_src>

<mosaic_0001>
module attributes {stable_mosaic.version = 11 : i64} {
  func.func @aggr_kernel(%arg0: i32, %arg1: memref<16x16xf32, #tpu.memory_space<vmem>>, %arg2: memref<16x32xf32, #tpu.memory_space<vmem>>, %arg3: memref<4x32xf32, #tpu.memory_space<vmem>>, %arg4: memref<32x32xf32, #tpu.memory_space<vmem>>, %arg5: memref<1x32xf32, #tpu.memory_space<vmem>>, %arg6: memref<2x32xf32, #tpu.memory_space<vmem>>) attributes {dimension_semantics = [#tpu.dimension_semantics<parallel>], iteration_bounds = array<i64: 1>, scalar_prefetch = 0 : i64, scratch_operands = 0 : i64, tpu.core_type = #tpu.core_type<tc>, window_params = [{transform_indices = @transform_0, window_bounds = array<i64: 16, 16>}, {pipeline_mode = #tpu.pipeline_mode<synchronous>, transform_indices = @transform_1, window_bounds = array<i64: 16, 32>}, {pipeline_mode = #tpu.pipeline_mode<synchronous>, transform_indices = @transform_2, window_bounds = array<i64: 4, 32>}, {pipeline_mode = #tpu.pipeline_mode<synchronous>, transform_indices = @transform_3, window_bounds = array<i64: 32, 32>}, {pipeline_mode = #tpu.pipeline_mode<synchronous>, transform_indices = @transform_4, window_bounds = array<i64: 1, 32>}, {transform_indices = @transform_5, window_bounds = array<i64: 2, 32>}]} {
    %c0 = arith.constant 0 : index
    %c0_0 = arith.constant 0 : index
    %0 = vector.load %arg3[%c0, %c0_0] : memref<4x32xf32, #tpu.memory_space<vmem>>, vector<1x32xf32>
    %c1 = arith.constant 1 : index
    %c0_1 = arith.constant 0 : index
    %1 = vector.load %arg3[%c1, %c0_1] : memref<4x32xf32, #tpu.memory_space<vmem>>, vector<1x32xf32>
    %c2 = arith.constant 2 : index
    %c0_2 = arith.constant 0 : index
    %2 = vector.load %arg3[%c2, %c0_2] : memref<4x32xf32, #tpu.memory_space<vmem>>, vector<1x32xf32>
    %c3 = arith.constant 3 : index
    %c0_3 = arith.constant 0 : index
    %3 = vector.load %arg3[%c3, %c0_3] : memref<4x32xf32, #tpu.memory_space<vmem>>, vector<1x32xf32>
    %c0_4 = arith.constant 0 : index
    %c0_5 = arith.constant 0 : index
    %4 = vector.load %arg5[%c0_4, %c0_5] : memref<1x32xf32, #tpu.memory_space<vmem>>, vector<1x32xf32>
    %c0_6 = arith.constant 0 : index
    %c0_7 = arith.constant 0 : index
    %5 = vector.load %arg1[%c0_6, %c0_7] : memref<16x16xf32, #tpu.memory_space<vmem>>, vector<16x16xf32>
    %c0_8 = arith.constant 0 : index
    %c0_9 = arith.constant 0 : index
    %6 = vector.load %arg2[%c0_8, %c0_9] : memref<16x32xf32, #tpu.memory_space<vmem>>, vector<16x32xf32>
    %cst = arith.constant dense<0.000000e+00> : vector<16x32xf32>
    %7 = tpu.matmul %5, %6, %cst {dimension_numbers = #tpu.dot_dimension_numbers<[1], [0], [0], [1], [0, 0, 1, 1], [], []>} : vector<16x16xf32>, vector<16x32xf32>, vector<16x32xf32> -> vector<16x32xf32>
    %8 = vector.broadcast %0 : vector<1x32xf32> to vector<16x32xf32>
    %9 = arith.addf %7, %8 : vector<16x32xf32>
    %10 = math.tanh %9 : vector<16x32xf32>
    %cst_10 = arith.constant dense<0.000000e+00> : vector<16xf32>
    %11 = vector.multi_reduction <add>, %10, %cst_10 [1] : vector<16x32xf32> to vector<16xf32>
    %12 = vector.shape_cast %11 : vector<16xf32> to vector<16x1xf32>
    %cst_11 = arith.constant 3.200000e+01 : f32
    %13 = vector.broadcast %cst_11 : f32 to vector<16x1xf32>
    %14 = arith.divf %12, %13 : vector<16x1xf32>
    %15 = vector.broadcast %14 : vector<16x1xf32> to vector<16x32xf32>
    %16 = arith.subf %10, %15 : vector<16x32xf32>
    %17 = arith.mulf %16, %16 : vector<16x32xf32>
    %cst_12 = arith.constant dense<0.000000e+00> : vector<16xf32>
    %18 = vector.multi_reduction <add>, %17, %cst_12 [1] : vector<16x32xf32> to vector<16xf32>
    %19 = vector.shape_cast %18 : vector<16xf32> to vector<16x1xf32>
    %cst_13 = arith.constant 3.200000e+01 : f32
    %20 = vector.broadcast %cst_13 : f32 to vector<16x1xf32>
    %21 = arith.divf %19, %20 : vector<16x1xf32>
    %22 = vector.broadcast %14 : vector<16x1xf32> to vector<16x32xf32>
    %23 = arith.subf %10, %22 : vector<16x32xf32>
    %cst_14 = arith.constant 9.99999974E-6 : f32
    %24 = vector.broadcast %cst_14 : f32 to vector<16x1xf32>
    %25 = arith.addf %21, %24 : vector<16x1xf32>
    %26 = math.rsqrt %25 : vector<16x1xf32>
    %27 = vector.broadcast %26 : vector<16x1xf32> to vector<16x32xf32>
    %28 = arith.mulf %23, %27 : vector<16x32xf32>
    %29 = vector.broadcast %1 : vector<1x32xf32> to vector<16x32xf32>
    %30 = arith.mulf %28, %29 : vector<16x32xf32>
    %31 = vector.broadcast %2 : vector<1x32xf32> to vector<16x32xf32>
    %32 = arith.addf %30, %31 : vector<16x32xf32>
    %c0_15 = arith.constant 0 : index
    %c0_16 = arith.constant 0 : index
    %33 = vector.load %arg4[%c0_15, %c0_16] : memref<32x32xf32, #tpu.memory_space<vmem>>, vector<32x32xf32>
    %cst_17 = arith.constant dense<0.000000e+00> : vector<16x32xf32>
    %34 = tpu.matmul %32, %33, %cst_17 {dimension_numbers = #tpu.dot_dimension_numbers<[1], [0], [0], [1], [0, 0, 1, 1], [], []>} : vector<16x32xf32>, vector<32x32xf32>, vector<16x32xf32> -> vector<16x32xf32>
    %35 = vector.broadcast %4 : vector<1x32xf32> to vector<16x32xf32>
    %36 = arith.addf %34, %35 : vector<16x32xf32>
    %37 = vector.broadcast %3 : vector<1x32xf32> to vector<16x32xf32>
    %38 = arith.mulf %32, %37 : vector<16x32xf32>
    %cst_18 = arith.constant dense<0.000000e+00> : vector<16xf32>
    %39 = vector.multi_reduction <add>, %38, %cst_18 [1] : vector<16x32xf32> to vector<16xf32>
    %40 = vector.shape_cast %39 : vector<16xf32> to vector<16x1xf32>
    %41 = vector.shape_cast %36 : vector<16x32xf32> to vector<2x8x32xf32>
    %42 = vector.shape_cast %40 : vector<16x1xf32> to vector<2x8x1xf32>
    %cst_19 = arith.constant dense<0xFF800000> : vector<2x1xf32>
    %43 = vector.multi_reduction <maximumf>, %42, %cst_19 [1] : vector<2x8x1xf32> to vector<2x1xf32>
    %44 = vector.shape_cast %43 : vector<2x1xf32> to vector<2x1x1xf32>
    %45 = vector.broadcast %44 : vector<2x1x1xf32> to vector<2x8x1xf32>
    %46 = arith.subf %42, %45 : vector<2x8x1xf32>
    %47 = math.exp %46 : vector<2x8x1xf32>
    %cst_20 = arith.constant dense<0.000000e+00> : vector<2x1xf32>
    %48 = vector.multi_reduction <add>, %47, %cst_20 [1] : vector<2x8x1xf32> to vector<2x1xf32>
    %49 = vector.shape_cast %48 : vector<2x1xf32> to vector<2x1x1xf32>
    %50 = tpu.reciprocal %49 : vector<2x1x1xf32> -> vector<2x1x1xf32>
    %51 = vector.broadcast %50 : vector<2x1x1xf32> to vector<2x8x1xf32>
    %52 = arith.mulf %47, %51 : vector<2x8x1xf32>
    %53 = vector.broadcast %52 : vector<2x8x1xf32> to vector<2x8x32xf32>
    %54 = arith.mulf %53, %41 : vector<2x8x32xf32>
    %cst_21 = arith.constant dense<0.000000e+00> : vector<2x32xf32>
    %55 = vector.multi_reduction <add>, %54, %cst_21 [1] : vector<2x8x32xf32> to vector<2x32xf32>
    %c0_22 = arith.constant 0 : index
    %c0_23 = arith.constant 0 : index
    %56 = vector.load %arg6[%c0_22, %c0_23] : memref<2x32xf32, #tpu.memory_space<vmem>>, vector<2x32xf32>
    tpu.vector_store %arg6[%c0_22, %c0_23], %55 {strides = array<i32>} : memref<2x32xf32, #tpu.memory_space<vmem>>, vector<2x32xf32>,
    return
  }
  func.func @transform_0(%arg0: i32) -> (i32, i32) {
    %c0_i32 = arith.constant 0 : i32
    %c0_i32_0 = arith.constant 0 : i32
    return %arg0, %c0_i32 : i32, i32
  }
  func.func @transform_1(%arg0: i32) -> (i32, i32) {
    %c0_i32 = arith.constant 0 : i32
    %c0_i32_0 = arith.constant 0 : i32
    %c0_i32_1 = arith.constant 0 : i32
    return %c0_i32, %c0_i32_0 : i32, i32
  }
  func.func @transform_2(%arg0: i32) -> (i32, i32) {
    %c0_i32 = arith.constant 0 : i32
    %c0_i32_0 = arith.constant 0 : i32
    %c0_i32_1 = arith.constant 0 : i32
    return %c0_i32, %c0_i32_0 : i32, i32
  }
  func.func @transform_3(%arg0: i32) -> (i32, i32) {
    %c0_i32 = arith.constant 0 : i32
    %c0_i32_0 = arith.constant 0 : i32
    %c0_i32_1 = arith.constant 0 : i32
    return %c0_i32, %c0_i32_0 : i32, i32
  }
  func.func @transform_4(%arg0: i32) -> (i32, i32) {
    %c0_i32 = arith.constant 0 : i32
    %c0_i32_0 = arith.constant 0 : i32
    %c0_i32_1 = arith.constant 0 : i32
    return %c0_i32, %c0_i32_0 : i32, i32
  }
  func.func @transform_5(%arg0: i32) -> (i32, i32) {
    %c0_i32 = arith.constant 0 : i32
    %c0_i32_0 = arith.constant 0 : i32
    return %arg0, %c0_i32 : i32, i32
  }
}

</mosaic_0001>

<llo_original>
// kernel: tpu_custom_call.1
$region0: #{tpu_custom_call.1}
  #allocation0 [shape = 'u32[]', space=smem, size = 0x4, offset = 0x4, fixed_abs, tag = 'smem constant byte address 0x4 - core index']
  #allocation1 [shape = 'u32[144,128]{1,0:T(1,128)}', space=vmem, size = 0x12000, scoped, tag = 'internal scratch']
  %s0 = inlined_call_operand.hbm [shape: f32[16,16], index: 0, kind: input, shape index: {}]
  %s1 = inlined_call_operand.hbm [shape: f32[16,32], index: 1, kind: input, shape index: {}]
  %s2 = inlined_call_operand.vmem [shape: f32[4,32], index: 2, kind: input, shape index: {}]
  %s3 = inlined_call_operand.hbm [shape: f32[32,32], index: 3, kind: input, shape index: {}]
  %s4 = inlined_call_operand.vmem [shape: f32[1,32], index: 4, kind: input, shape index: {}]
  %s5 = inlined_call_operand.hbm [shape: f32[2,32], index: 5, kind: output, shape index: {}]
  %s6 = sld [smem:[#allocation0]]
  $region42: #{tpu_custom_call.1} parent=0
    _
  %s8 = ssub.s32 1, %s6
  %s9 = scalar_select 0, %s8, %s6
  $region1: #{tpu_custom_call.1} parent=0
    #allocation2 [shape = 'u8[8192]{0}', space=vmem, size = 0x2000, scoped, tag = 'input window, operand 0, single buffered']
    #allocation3 [shape = 's32[1]{0}', space=sflag, size = 0x4, scoped, tag = 'scoped memory for tpu_custom_call.1']
    #allocation4 [shape = 's32[1]{0}', space=sflag, size = 0x4, scoped, tag = 'scoped memory for tpu_custom_call.1']
    #allocation5 [shape = 'u8[8192]{0}', space=vmem, size = 0x2000, scoped, tag = 'input window, operand 1, single buffered']
    #allocation6 [shape = 's32[1]{0}', space=sflag, size = 0x4, scoped, tag = 'scoped memory for tpu_custom_call.1']
    #allocation7 [shape = 'u8[16384]{0}', space=vmem, size = 0x4000, scoped, tag = 'input window, operand 3, single buffered']
    #allocation8 [shape = 'u8[1024]{0}', space=vmem, size = 0x400, scoped, tag = 'output window, operand 0, single buffered']
    %10 = vsyncpa [#allocation3], 0
    %11 = vsyncpa [#allocation6], 0
    %12 = vsyncpa [#allocation4], 0
    // Predicated region
    $region2: #{tpu_custom_call.1} parent=1 // pred_check
      _
    $region3: #{tpu_custom_call.1} parent=1 // pred_check_branch
      %14 = sbr.rel (0) target = $region5
    $region4: #{tpu_custom_call.1} parent=1 // pred_region
      %s16 = ssub.s32 256, 256
      %17 = vsyncadd [#allocation3], %s16
      %s18 = sshll.u32 [#allocation2], 4
      %s19 = int_to_ptr.vmem [resolvable:$true] %s18
      %24 = dma.hbm_to_vmem [thread:$0]  %s0, 256, %s19, [#allocation3], 128, 128, 8
    $region5: #{tpu_custom_call.1} parent=1 // pred_fallthru
      _
    // Predicated region
    $region6: #{tpu_custom_call.1} parent=1 // pred_check
      _
    $region7: #{tpu_custom_call.1} parent=1 // pred_check_branch
      %26 = sbr.rel (0) target = $region9
    $region8: #{tpu_custom_call.1} parent=1 // pred_region
      %s28 = ssub.s32 256, 256
      %29 = vsyncadd [#allocation6], %s28
      %s30 = sshll.u32 [#allocation5], 4
      %s31 = int_to_ptr.vmem [resolvable:$true] %s30
      %36 = dma.hbm_to_vmem [thread:$0]  %s1, 256, %s31, [#allocation6], 128, 128, 8
    $region9: #{tpu_custom_call.1} parent=1 // pred_fallthru
      _
    // Predicated region
    $region10: #{tpu_custom_call.1} parent=1 // pred_check
      _
    $region11: #{tpu_custom_call.1} parent=1 // pred_check_branch
      %38 = sbr.rel (0) target = $region13
    $region12: #{tpu_custom_call.1} parent=1 // pred_region
      _
    $region13: #{tpu_custom_call.1} parent=1 // pred_fallthru
      _
    // Predicated region
    $region14: #{tpu_custom_call.1} parent=1 // pred_check
      _
    $region15: #{tpu_custom_call.1} parent=1 // pred_check_branch
      %40 = sbr.rel (0) target = $region17
    $region16: #{tpu_custom_call.1} parent=1 // pred_region
      %s42 = ssub.s32 512, 512
      %43 = vsyncadd [#allocation6], %s42
      %s44 = sshll.u32 [#allocation7], 4
      %s45 = int_to_ptr.vmem [resolvable:$true] %s44
      %50 = dma.hbm_to_vmem [thread:$0]  %s3, 512, %s45, [#allocation6], 128, 128, 8
    $region17: #{tpu_custom_call.1} parent=1 // pred_fallthru
      _
    // Predicated region
    $region18: #{tpu_custom_call.1} parent=1 // pred_check
      _
    $region19: #{tpu_custom_call.1} parent=1 // pred_check_branch
      %52 = sbr.rel (0) target = $region21
    $region20: #{tpu_custom_call.1} parent=1 // pred_region
      _
    $region21: #{tpu_custom_call.1} parent=1 // pred_fallthru
      _
    // Predicated region
    $region22: #{tpu_custom_call.1} parent=1 // pred_check
      _
    $region23: #{tpu_custom_call.1} parent=1 // pred_check_branch
      %54 = sbr.rel (0) target = $region25
    $region24: #{tpu_custom_call.1} parent=1 // pred_region
      %55 = dma.done [#allocation3], 256
    $region25: #{tpu_custom_call.1} parent=1 // pred_fallthru
      _
    // Predicated region
    $region26: #{tpu_custom_call.1} parent=1 // pred_check
      _
    $region27: #{tpu_custom_call.1} parent=1 // pred_check_branch
      %57 = sbr.rel (0) target = $region29
    $region28: #{tpu_custom_call.1} parent=1 // pred_region
      %58 = dma.done [#allocation6], 256
    $region29: #{tpu_custom_call.1} parent=1 // pred_fallthru
      _
    // Predicated region
    $region30: #{tpu_custom_call.1} parent=1 // pred_check
      _
    $region31: #{tpu_custom_call.1} parent=1 // pred_check_branch
      %60 = sbr.rel (0) target = $region33
    $region32: #{tpu_custom_call.1} parent=1 // pred_region
      %61 = dma.done [#allocation6], 512
    $region33: #{tpu_custom_call.1} parent=1 // pred_fallthru
      _
    %v62 = vld [vmem:[%s2] sm:$0x1]
    %v63 = vld [vmem:[%s2 + $0x1] sm:$0x1]
    %v64 = vld [vmem:[%s2 + $0x2] sm:$0x1]
    %v65 = vld [vmem:[%s2 + $0x3] sm:$0x1]
    %v66 = vld [vmem:[%s4] sm:$0x1]
    %v67 = vld [vmem:[#allocation2] sm:$0xff]
    %v68 = vld [vmem:[#allocation2 + $0x8] sm:$0xff]
    %v69 = vld [vmem:[#allocation5] sm:$0xff]
    %v70 = vld [vmem:[#allocation5 + $0x8] sm:$0xff]
    %v71 = vlaneseq
    %v72 = vshrl.u32 %v71, 7
    %v73 = vsub.s32 0, %v72
    %v74 = vrot.slane %v62, %v73
    %vm75 = vcmask 130048
    %v77 = vsel %vm75, %v67, 0
    %v80 = vsel %vm75, %v68, 0
    %82 = vmatprep.subr.mxu0 0.0
    %83 = vmatpush1.msra.mxu0 %v69
    %84 = vmatprep.subr.mxu0 0.0
    %85 = vmatpush1.msra.mxu0 %v70
    %86 = vmatprep.subr.mxu0 0.0
    %87 = vmatpush1.msra.mxu0 0.0
    %88 = vmatprep.subr.mxu0 0.0
    %89 = vmatpush1.msra.mxu0 0.0
    %90 = vmatprep.subr.mxu0 0.0
    %91 = vmatpush1.msra.mxu0 0.0
    %92 = vmatprep.subr.mxu0 0.0
    %93 = vmatpush1.msra.mxu0 0.0
    %94 = vmatprep.subr.mxu0 0.0
    %95 = vmatpush1.msra.mxu0 0.0
    %96 = vmatprep.subr.mxu0 0.0
    %97 = vmatpush1.msra.mxu0 0.0
    %98 = vmatprep.subr.mxu0 0.0
    %99 = vmatpush1.msra.mxu0 0.0
    %100 = vmatprep.subr.mxu0 0.0
    %101 = vmatpush1.msra.mxu0 0.0
    %102 = vmatprep.subr.mxu0 0.0
    %103 = vmatpush1.msra.mxu0 0.0
    %104 = vmatprep.subr.mxu0 0.0
    %105 = vmatpush1.msra.mxu0 0.0
    %106 = vmatprep.subr.mxu0 0.0
    %107 = vmatpush1.msra.mxu0 0.0
    %108 = vmatprep.subr.mxu0 0.0
    %109 = vmatpush1.msra.mxu0 0.0
    %110 = vmatprep.subr.mxu0 0.0
    %111 = vmatpush1.msra.mxu0 0.0
    %112 = vmatprep.subr.mxu0 0.0
    %113 = vmatpush1.msra.mxu0 0.0
    %114 = vmatprep.subr.mxu0 0.0
    %115 = vmatpush1.msra.mxu0 0.0
    %116 = vmatprep.subr.mxu0 0.0
    %117 = vmatpush1.msra.mxu0 0.0
    %118 = vmatprep.subr.mxu0 0.0
    %119 = vmatpush1.msra.mxu0 0.0
    %120 = vmatprep.subr.mxu0 0.0
    %121 = vmatpush1.msra.mxu0 0.0
    %122 = vmatprep.subr.mxu0 0.0
    %123 = vmatpush1.msra.mxu0 0.0
    %124 = vmatprep.subr.mxu0 0.0
    %125 = vmatpush1.msra.mxu0 0.0
    %126 = vmatprep.subr.mxu0 0.0
    %127 = vmatpush1.msra.mxu0 0.0
    %128 = vmatprep.subr.mxu0 0.0
    %129 = vmatpush1.msra.mxu0 0.0
    %130 = vmatprep.subr.mxu0 0.0
    %131 = vmatpush1.msra.mxu0 0.0
    %132 = vmatprep.subr.mxu0 0.0
    %133 = vmatpush1.msra.mxu0 0.0
    %134 = vmatprep.subr.mxu0 0.0
    %135 = vmatpush1.msra.mxu0 0.0
    %136 = vmatprep.subr.mxu0 0.0
    %137 = vmatpush1.msra.mxu0 0.0
    %138 = vmatprep.subr.mxu0 0.0
    %139 = vmatpush1.msra.mxu0 0.0
    %140 = vmatprep.subr.mxu0 0.0
    %141 = vmatpush1.msra.mxu0 0.0
    %142 = vmatprep.subr.mxu0 0.0
    %143 = vmatpush1.msra.mxu0 0.0
    %144 = vmatprep.subr.mxu0 0.0
    %145 = vmatpush1.msra.mxu0 0.0
    %146 = vmatprep.mubr.f32.mxu0 0.0
    %147 = vmatmul.mubr.f32.gmra.mrb[0].mxu0 %v77
    %v148 = vpop.f32.mrb[0].mxu0
    %v149 = vadd.f32 %v74, %v148
    %v150 = vpop.f32.mrb[0].mxu0
    %151 = vmatprep.mubr.f32.mxu0 0.0
    %152 = vmatmul.mubr.f32.gmra.mrb[0].mxu0 %v80
    %v153 = vpop.f32.mrb[0].mxu0
    %v154 = vadd.f32 %v74, %v153
    %v155 = vpop.f32.mrb[0].mxu0
    %156 = vdwg.mxu0
    %v157 = vtanh.pop %v149
    %v158 = vtanh.pop %v154
    %vm159 = vcmask 261120
    %v160 = vsel %vm159, %v157, 0.0
    %161 = vadd.xlane.f32.xlu0 %v160
    %v162 = vpop.xlane.xlu0 %161
    %v163 = vsel %vm159, %v158, 0.0
    %164 = vadd.xlane.f32.xlu0 %v163
    %v165 = vpop.xlane.xlu0 %164
    %v166 = vrcp.pop 32.0
    %v167 = vmul.f32 %v162, %v166
    %v168 = vmul.f32 %v165, %v166
    %v169 = vsub.f32 %v157, %v167
    %v170 = vsub.f32 %v158, %v168
    %v171 = vmul.f32 %v169, %v169
    %v172 = vmul.f32 %v170, %v170
    %v173 = vsel %vm159, %v171, 0.0
    %174 = vadd.xlane.f32.xlu0 %v173
    %v175 = vpop.xlane.xlu0 %174
    %v176 = vsel %vm159, %v172, 0.0
    %177 = vadd.xlane.f32.xlu0 %v176
    %v178 = vpop.xlane.xlu0 %177
    %v179 = vmul.f32 %v175, %v166
    %v180 = vmul.f32 %v178, %v166
    %v181 = vadd.f32 %v179, 1e-05
    %v182 = vadd.f32 %v180, 1e-05
    %v183 = vrsqrt.pop %v181
    %v184 = vrsqrt.pop %v182
    %v185 = vmul.f32 %v169, %v183
    %v186 = vmul.f32 %v170, %v184
    %v187 = vlaneseq
    %v188 = vshrl.u32 %v187, 7
    %v189 = vsub.s32 0, %v188
    %v190 = vrot.slane %v63, %v189
    %v191 = vmul.f32 %v185, %v190
    %v192 = vmul.f32 %v186, %v190
    %v193 = vlaneseq
    %v194 = vshrl.u32 %v193, 7
    %v195 = vsub.s32 0, %v194
    %v196 = vrot.slane %v64, %v195
    %v197 = vadd.f32 %v191, %v196
    %v198 = vadd.f32 %v192, %v196
    %v199 = vld [vmem:[#allocation7] sm:$0xff]
    %v200 = vld [vmem:[#allocation7 + $0x8] sm:$0xff]
    %v201 = vld [vmem:[#allocation7 + $0x10] sm:$0xff]
    %v202 = vld [vmem:[#allocation7 + $0x18] sm:$0xff]
    %v204 = vlaneseq
    %v205 = vshrl.u32 %v204, 7
    %v206 = vsub.s32 0, %v205
    %v207 = vrot.slane %v66, %v206
    %v210 = vsel %vm159, %v197, 0
    %v213 = vsel %vm159, %v198, 0
    %215 = vmatprep.subr.mxu0 0.0
    %216 = vmatpush1.msra.mxu0 %v199
    %217 = vmatprep.subr.mxu0 0.0
    %218 = vmatpush1.msra.mxu0 %v200
    %219 = vmatprep.subr.mxu0 0.0
    %220 = vmatpush1.msra.mxu0 %v201
    %221 = vmatprep.subr.mxu0 0.0
    %222 = vmatpush1.msra.mxu0 %v202
    %223 = vmatprep.subr.mxu0 0.0
    %224 = vmatpush1.msra.mxu0 0.0
    %225 = vmatprep.subr.mxu0 0.0
    %226 = vmatpush1.msra.mxu0 0.0
    %227 = vmatprep.subr.mxu0 0.0
    %228 = vmatpush1.msra.mxu0 0.0
    %229 = vmatprep.subr.mxu0 0.0
    %230 = vmatpush1.msra.mxu0 0.0
    %231 = vmatprep.subr.mxu0 0.0
    %232 = vmatpush1.msra.mxu0 0.0
    %233 = vmatprep.subr.mxu0 0.0
    %234 = vmatpush1.msra.mxu0 0.0
    %235 = vmatprep.subr.mxu0 0.0
    %236 = vmatpush1.msra.mxu0 0.0
    %237 = vmatprep.subr.mxu0 0.0
    %238 = vmatpush1.msra.mxu0 0.0
    %239 = vmatprep.subr.mxu0 0.0
    %240 = vmatpush1.msra.mxu0 0.0
    %241 = vmatprep.subr.mxu0 0.0
    %242 = vmatpush1.msra.mxu0 0.0
    %243 = vmatprep.subr.mxu0 0.0
    %244 = vmatpush1.msra.mxu0 0.0
    %245 = vmatprep.subr.mxu0 0.0
    %246 = vmatpush1.msra.mxu0 0.0
    %247 = vmatprep.subr.mxu0 0.0
    %248 = vmatpush1.msra.mxu0 0.0
    %249 = vmatprep.subr.mxu0 0.0
    %250 = vmatpush1.msra.mxu0 0.0
    %251 = vmatprep.subr.mxu0 0.0
    %252 = vmatpush1.msra.mxu0 0.0
    %253 = vmatprep.subr.mxu0 0.0
    %254 = vmatpush1.msra.mxu0 0.0
    %255 = vmatprep.subr.mxu0 0.0
    %256 = vmatpush1.msra.mxu0 0.0
    %257 = vmatprep.subr.mxu0 0.0
    %258 = vmatpush1.msra.mxu0 0.0
    %259 = vmatprep.subr.mxu0 0.0
    %260 = vmatpush1.msra.mxu0 0.0
    %261 = vmatprep.subr.mxu0 0.0
    %262 = vmatpush1.msra.mxu0 0.0
    %263 = vmatprep.subr.mxu0 0.0
    %264 = vmatpush1.msra.mxu0 0.0
    %265 = vmatprep.subr.mxu0 0.0
    %266 = vmatpush1.msra.mxu0 0.0
    %267 = vmatprep.subr.mxu0 0.0
    %268 = vmatpush1.msra.mxu0 0.0
    %269 = vmatprep.subr.mxu0 0.0
    %270 = vmatpush1.msra.mxu0 0.0
    %271 = vmatprep.subr.mxu0 0.0
    %272 = vmatpush1.msra.mxu0 0.0
    %273 = vmatprep.subr.mxu0 0.0
    %274 = vmatpush1.msra.mxu0 0.0
    %275 = vmatprep.subr.mxu0 0.0
    %276 = vmatpush1.msra.mxu0 0.0
    %277 = vmatprep.subr.mxu0 0.0
    %278 = vmatpush1.msra.mxu0 0.0
    %279 = vmatprep.mubr.f32.mxu0 0.0
    %280 = vmatmul.mubr.f32.gmra.mrb[0].mxu0 %v210
    %v281 = vpop.f32.mrb[0].mxu0
    %v282 = vadd.f32 %v207, %v281
    %v283 = vpop.f32.mrb[0].mxu0
    %284 = vmatprep.mubr.f32.mxu0 0.0
    %285 = vmatmul.mubr.f32.gmra.mrb[0].mxu0 %v213
    %v286 = vpop.f32.mrb[0].mxu0
    %v287 = vadd.f32 %v207, %v286
    %v288 = vpop.f32.mrb[0].mxu0
    %289 = vdwg.mxu0
    %v290 = vlaneseq
    %v291 = vshrl.u32 %v290, 7
    %v292 = vsub.s32 0, %v291
    %v293 = vrot.slane %v65, %v292
    %v294 = vmul.f32 %v197, %v293
    %v295 = vmul.f32 %v198, %v293
    %v296 = vsel %vm159, %v294, 0.0
    %297 = vadd.xlane.f32.xlu0 %v296
    %v298 = vpop.xlane.xlu0 %297
    %v299 = vsel %vm159, %v295, 0.0
    %300 = vadd.xlane.f32.xlu0 %v299
    %v301 = vpop.xlane.xlu0 %300
    %v302 = vrot.slane %v298, 4
    %v303 = vmax.f32 %v298, %v302
    %v304 = vrot.slane %v303, 2
    %v305 = vmax.f32 %v303, %v304
    %v306 = vrot.slane %v305, 1
    %v307 = vmax.f32 %v305, %v306
    %v308 = vrot.slane %v301, 4
    %v309 = vmax.f32 %v301, %v308
    %v310 = vrot.slane %v309, 2
    %v311 = vmax.f32 %v309, %v310
    %v312 = vrot.slane %v311, 1
    %v313 = vmax.f32 %v311, %v312
    %v314 = vsub.f32 %v298, %v307
    %v315 = vsub.f32 %v301, %v313
    %v316 = vmul.f32 %v314, 1.442695
    %v317 = vpow.pop %v316
    %v318 = vmul.f32 %v315, 1.442695
    %v319 = vpow.pop %v318
    %v320 = vrot.slane %v317, 4
    %v321 = vadd.f32 %v317, %v320
    %v322 = vrot.slane %v321, 2
    %v323 = vadd.f32 %v321, %v322
    %v324 = vrot.slane %v323, 1
    %v325 = vadd.f32 %v323, %v324
    %v326 = vrot.slane %v319, 4
    %v327 = vadd.f32 %v319, %v326
    %v328 = vrot.slane %v327, 2
    %v329 = vadd.f32 %v327, %v328
    %v330 = vrot.slane %v329, 1
    %v331 = vadd.f32 %v329, %v330
    %v332 = vrcp.pop %v325
    %v333 = vrcp.pop %v331
    %v334 = vmul.f32 %v317, %v332
    %v335 = vmul.f32 %v319, %v333
    %v336 = vmul.f32 %v334, %v282
    %v337 = vmul.f32 %v335, %v287
    %v338 = vsel %vm159, %v336, 0.0
    %v339 = vrot.slane %v338, 4
    %v340 = vadd.f32 %v338, %v339
    %v341 = vrot.slane %v340, 2
    %v342 = vadd.f32 %v340, %v341
    %v343 = vrot.slane %v342, 1
    %v344 = vadd.f32 %v342, %v343
    %v345 = vsel %vm159, %v337, 0.0
    %v346 = vrot.slane %v345, 4
    %v347 = vadd.f32 %v345, %v346
    %v348 = vrot.slane %v347, 2
    %v349 = vadd.f32 %v347, %v348
    %v350 = vrot.slane %v349, 1
    %v351 = vadd.f32 %v349, %v350
    %vm354 = vcmask 1041409
    %v355 = vsel %vm354, %v351, %v344
    %vm357 = vcmask 254976
    %358 = vst.msk [vmem:[#allocation8] sm:$0x3] %vm357, %v355
    // Predicated region
    $region34: #{tpu_custom_call.1} parent=1 // pred_check
      _
    $region35: #{tpu_custom_call.1} parent=1 // pred_check_branch
      %360 = sbr.rel (0) target = $region37
    $region36: #{tpu_custom_call.1} parent=1 // pred_region
      %s362 = ssub.s32 32, 32
      %363 = vsyncadd [#allocation4], %s362
      %s365 = sshll.u32 [#allocation8], 4
      %s366 = int_to_ptr.vmem [resolvable:$true] %s365
      %368 = dma.vmem_to_hbm [thread:$0]  %s366, 32, %s5, [#allocation4]
    $region37: #{tpu_custom_call.1} parent=1 // pred_fallthru
      _
    // Predicated region
    $region38: #{tpu_custom_call.1} parent=1 // pred_check
      _
    $region39: #{tpu_custom_call.1} parent=1 // pred_check_branch
      %370 = sbr.rel (0) target = $region41
    $region40: #{tpu_custom_call.1} parent=1 // pred_region
      %371 = dma.done [#allocation4], 32
    $region41: #{tpu_custom_call.1} parent=1 // pred_fallthru
      _
    %372 = vsyncpa [#allocation3], 1
    %373 = vsyncpa [#allocation6], 1
    %374 = vsyncpa [#allocation4], 1

</llo_original>
